<compile_context>
chip_gen: v7x
topology: tpu7x:2x2x1
jax: 0.10.0
libtpu: 0.0.40
codegen_flags: <defaults>
</compile_context>

<pallas_src>
import math

import jax
import jax.numpy as jnp
from jax.experimental import pallas as pl
from jax.experimental.pallas import tpu as pltpu


def _build_pe_table(max_len: int, d_model: int) -> jnp.ndarray:
    """Deterministic sinusoidal positional-encoding table [max_len, d_model]."""
    position = jnp.arange(0, max_len, dtype=jnp.float32)[:, None]          # [max_len, 1]
    div_term = jnp.exp(
        jnp.arange(0, d_model, 2, dtype=jnp.float32) * (-math.log(10000.0) / d_model)
    )                                                                       # [d_model//2]
    angles = position * div_term                                            # [max_len, d_model//2]
    pe = jnp.zeros((max_len, d_model), dtype=jnp.float32)
    pe = pe.at[:, 0::2].set(jnp.sin(angles))
    pe = pe.at[:, 1::2].set(jnp.cos(angles))
    return pe


def _pe_add_kernel(x_ref, pe_ref, o_ref):
    # x_ref/o_ref: (TS, B*D)   pe_ref: (TS, B*D)   -- pure streaming add.
    o_ref[...] = (x_ref[...] + pe_ref[...]).astype(o_ref.dtype)


def positional_encoding_forward(x: jnp.ndarray, pe_table: jnp.ndarray) -> jnp.ndarray:
    """x: [seq_len, batch, d_model].  Returns x + pe[:seq_len] (eval-mode dropout)."""
    seq_len, batch, d_model = x.shape
    bd = batch * d_model

    # Glue (computed once, analogous to the PyTorch registered buffer):
    # slice the table and tile across batch to match the lane-dense layout.
    pe_flat = jnp.tile(pe_table[:seq_len], (1, batch))          # [S, B*D] float32

    x2d = x.reshape(seq_len, bd)                                # lane-dense slab

    # Tile size: ~2 MiB of x per tile, a multiple of 8 sublanes (or the full
    # seq_len for tiny inputs).  Double-buffered x + pe + out then stays around
    # ~12 MiB, fitting every generation's scoped VMEM (incl. v7x's 64 MiB
    # physical) while amortizing the ~0.35 us per-grid-step overhead.
    row_bytes = bd * jnp.dtype(x.dtype).itemsize
    target_tile_bytes = 2 * 1024 * 1024
    ts = min(seq_len, max(8, (target_tile_bytes // max(row_bytes, 1)) // 8 * 8))

    out2d = pl.pallas_call(
        _pe_add_kernel,
        out_shape=jax.ShapeDtypeStruct((seq_len, bd), x.dtype),
        grid=(pl.cdiv(seq_len, ts),),
        in_specs=[
            pl.BlockSpec((ts, bd), lambda i: (i, 0)),   # x tile
            pl.BlockSpec((ts, bd), lambda i: (i, 0)),   # pe tile
        ],
        out_specs=pl.BlockSpec((ts, bd), lambda i: (i, 0)),
        input_output_aliases={0: 0},
        compiler_params=pltpu.CompilerParams(
            dimension_semantics=("parallel",),          # shard seq across TCs (v7x)
            vmem_limit_bytes=32 * 1024 * 1024,
        ),
    )(x2d, pe_flat)

    return out2d.reshape(seq_len, batch, d_model)


if __name__ == "__main__":
    d_model = 32
    max_len = 128      # module default is 5000; kept small for the smoke test
    seq_len = 8
    batch = 2

    key = jax.random.PRNGKey(0)
    x = jax.random.normal(key, (seq_len, batch, d_model), dtype=jnp.float32)

    pe_table = _build_pe_table(max_len, d_model)

    # Reference in plain JAX (eval-mode forward: x + pe[:S]; dropout = identity).
    ref = x + pe_table[:seq_len][:, None, :]

    out = positional_encoding_forward(x, pe_table)
    out = jax.block_until_ready(out)

    assert out.shape == (seq_len, batch, d_model)
    assert jnp.allclose(out, ref, atol=1e-6, rtol=1e-6)

    print("KERNEL_OK")
</pallas_src>

<mosaic_0001>
module attributes {stable_mosaic.version = 11 : i64} {
  func.func @_pe_add_kernel(%arg0: i32, %arg1: memref<8x64xf32, #tpu.memory_space<vmem>>, %arg2: memref<8x64xf32, #tpu.memory_space<vmem>>, %arg3: memref<8x64xf32, #tpu.memory_space<vmem>>) attributes {dimension_semantics = [#tpu.dimension_semantics<parallel>], iteration_bounds = array<i64: 1>, scalar_prefetch = 0 : i64, scratch_operands = 0 : i64, tpu.core_type = #tpu.core_type<tc>, window_params = [{transform_indices = @transform_0, window_bounds = array<i64: 8, 64>}, {transform_indices = @transform_1, window_bounds = array<i64: 8, 64>}, {transform_indices = @transform_2, window_bounds = array<i64: 8, 64>}]} {
    %c0 = arith.constant 0 : index
    %c0_0 = arith.constant 0 : index
    %0 = vector.load %arg1[%c0, %c0_0] : memref<8x64xf32, #tpu.memory_space<vmem>>, vector<8x64xf32>
    %c0_1 = arith.constant 0 : index
    %c0_2 = arith.constant 0 : index
    %1 = vector.load %arg2[%c0_1, %c0_2] : memref<8x64xf32, #tpu.memory_space<vmem>>, vector<8x64xf32>
    %2 = arith.addf %0, %1 : vector<8x64xf32>
    %c0_3 = arith.constant 0 : index
    %c0_4 = arith.constant 0 : index
    %3 = vector.load %arg3[%c0_3, %c0_4] : memref<8x64xf32, #tpu.memory_space<vmem>>, vector<8x64xf32>
    tpu.vector_store %arg3[%c0_3, %c0_4], %2 {strides = array<i32>} : memref<8x64xf32, #tpu.memory_space<vmem>>, vector<8x64xf32>,
    return
  }
  func.func @transform_0(%arg0: i32) -> (i32, i32) {
    %c0_i32 = arith.constant 0 : i32
    %c0_i32_0 = arith.constant 0 : i32
    return %arg0, %c0_i32 : i32, i32
  }
  func.func @transform_1(%arg0: i32) -> (i32, i32) {
    %c0_i32 = arith.constant 0 : i32
    %c0_i32_0 = arith.constant 0 : i32
    return %arg0, %c0_i32 : i32, i32
  }
  func.func @transform_2(%arg0: i32) -> (i32, i32) {
    %c0_i32 = arith.constant 0 : i32
    %c0_i32_0 = arith.constant 0 : i32
    return %arg0, %c0_i32 : i32, i32
  }
}

</mosaic_0001>

<llo_original>
// kernel: tpu_custom_call.1
$region0: #{tpu_custom_call.1}
  #allocation0 [shape = 'u32[]', space=smem, size = 0x4, offset = 0x4, fixed_abs, tag = 'smem constant byte address 0x4 - core index']
  #allocation1 [shape = 'u32[144,128]{1,0:T(1,128)}', space=vmem, size = 0x12000, scoped, tag = 'internal scratch']
  %s0 = inlined_call_operand.hbm [shape: f32[8,64], index: 0, kind: input, shape index: {}, may-alias: {0,2}]
  %s1 = inlined_call_operand.vmem [shape: f32[8,64], index: 1, kind: input, shape index: {}]
  %s2 = inlined_call_operand.hbm [shape: f32[8,64], index: 2, kind: output, shape index: {}, may-alias: {0,2}]
  %s3 = sld [smem:[#allocation0]]
  $region22: #{tpu_custom_call.1} parent=0
    _
  %s5 = ssub.s32 1, %s3
  %s6 = scalar_select 0, %s5, %s3
  $region1: #{tpu_custom_call.1} parent=0
    #allocation2 [shape = 'u8[4096]{0}', space=vmem, size = 0x1000, scoped, tag = 'input window, operand 0, single buffered']
    #allocation3 [shape = 's32[1]{0}', space=sflag, size = 0x4, scoped, tag = 'scoped memory for tpu_custom_call.1']
    #allocation4 [shape = 's32[1]{0}', space=sflag, size = 0x4, scoped, tag = 'scoped memory for tpu_custom_call.1']
    #allocation5 [shape = 'u8[4096]{0}', space=vmem, size = 0x1000, scoped, tag = 'output window, operand 0, single buffered']
    %7 = vsyncpa [#allocation3], 0
    %8 = vsyncpa [#allocation4], 0
    // Predicated region
    $region2: #{tpu_custom_call.1} parent=1 // pred_check
      _
    $region3: #{tpu_custom_call.1} parent=1 // pred_check_branch
      %10 = sbr.rel (0) target = $region5
    $region4: #{tpu_custom_call.1} parent=1 // pred_region
      %s12 = ssub.s32 128, 128
      %13 = vsyncadd [#allocation3], %s12
      %s15 = sshll.u32 [#allocation2], 4
      %s16 = int_to_ptr.vmem [resolvable:$true] %s15
      %18 = dma.hbm_to_vmem [thread:$0]  %s0, 128, %s16, [#allocation3]
    $region5: #{tpu_custom_call.1} parent=1 // pred_fallthru
      _
    // Predicated region
    $region6: #{tpu_custom_call.1} parent=1 // pred_check
      _
    $region7: #{tpu_custom_call.1} parent=1 // pred_check_branch
      %20 = sbr.rel (0) target = $region9
    $region8: #{tpu_custom_call.1} parent=1 // pred_region
      _
    $region9: #{tpu_custom_call.1} parent=1 // pred_fallthru
      _
    // Predicated region
    $region10: #{tpu_custom_call.1} parent=1 // pred_check
      _
    $region11: #{tpu_custom_call.1} parent=1 // pred_check_branch
      %22 = sbr.rel (0) target = $region13
    $region12: #{tpu_custom_call.1} parent=1 // pred_region
      %23 = dma.done [#allocation3], 128
    $region13: #{tpu_custom_call.1} parent=1 // pred_fallthru
      _
    %v24 = vld [vmem:[#allocation2] sm:$0xff]
    %v25 = vld [vmem:[%s1] sm:$0xff]
    %v26 = vadd.f32 %v24, %v25
    %vm27 = vcmask 523264
    %28 = vst.msk [vmem:[#allocation5] sm:$0xff] %vm27, %v26
    // Predicated region
    $region14: #{tpu_custom_call.1} parent=1 // pred_check
      _
    $region15: #{tpu_custom_call.1} parent=1 // pred_check_branch
      %30 = sbr.rel (0) target = $region17
    $region16: #{tpu_custom_call.1} parent=1 // pred_region
      %s32 = ssub.s32 128, 128
      %33 = vsyncadd [#allocation4], %s32
      %s35 = sshll.u32 [#allocation5], 4
      %s36 = int_to_ptr.vmem [resolvable:$true] %s35
      %38 = dma.vmem_to_hbm [thread:$0]  %s36, 128, %s2, [#allocation4]
    $region17: #{tpu_custom_call.1} parent=1 // pred_fallthru
      _
    // Predicated region
    $region18: #{tpu_custom_call.1} parent=1 // pred_check
      _
    $region19: #{tpu_custom_call.1} parent=1 // pred_check_branch
      %40 = sbr.rel (0) target = $region21
    $region20: #{tpu_custom_call.1} parent=1 // pred_region
      %41 = dma.done [#allocation4], 128
    $region21: #{tpu_custom_call.1} parent=1 // pred_fallthru
      _
    %42 = vsyncpa [#allocation3], 1
    %43 = vsyncpa [#allocation4], 1

</llo_original>
